<compile_context>
chip_gen: v5e
topology: v5e:2x2
jax: 0.10.0
libtpu: 0.0.40
codegen_flags: <defaults>
</compile_context>

<pallas_src>
import functools
from typing import NamedTuple

import jax
import jax.numpy as jnp
from jax import lax
from jax.experimental import pallas as pl
from jax.experimental.pallas import tpu as pltpu

LEAKY_SLOPE = 0.01        # nn.LeakyReLU() default negative_slope (as in the reference)
BN_EPS = 1e-5             # nn.BatchNorm2d default eps
ACT_DTYPE = jnp.bfloat16  # inter-layer activation / MXU operand dtype

_TM_MAX = 1024                     # largest tiled M block
_TM_FULL = 1536                    # below this, a single full-extent M block
_TK_MAX = 4608                     # largest single-step K (covers every layer here)
_VMEM_BUDGET = 28 * 1024 * 1024    # target double-buffered working set per pallas_call
_VMEM_LIMIT = 48 * 1024 * 1024     # scoped-VMEM limit (safe on v5e/v6e/v7x)


def _round_up(x, m):
    return ((x + m - 1) // m) * m


# ---------------------------------------------------------------------------
# tile-size selection
# ---------------------------------------------------------------------------
def _choose_tm(M):
    if M <= _TM_FULL:
        return _round_up(M, 8)          # single (almost) full-extent M block
    for t in range(_TM_MAX, 7, -8):     # largest multiple-of-8 divisor of M
        if M % t == 0:
            return t
    # TODO(synk): mask the tail M block in-kernel instead of padding a copy.
    return 512


def _choose_tk(Kp):
    if Kp <= _TK_MAX:
        return Kp                       # single K step -> no accumulator revolution
    for t in (4608, 2304, 2048, 1536, 1280, 1152, 1024, 768, 640, 512, 384, 256, 128):
        if Kp % t == 0:
            return t
    return 128


def _choose_tn(Np, m_blocks):
    if Np <= 256:
        return Np
    if m_blocks == 1:
        # skinny-M layer: split N into >=2 big lane-dense blocks so a
        # 2-TensorCore (v7x megacore) chip gets one >=256-wide block per core.
        for t in (512, 256, 128):
            if Np % t == 0 and Np // t >= 2:
                return t
        return Np
    for t in (256, 512, 128):
        if Np % t == 0:
            return t
    return Np


def _fit_vmem(tm, tk, tn, Kp, Np, has_res):
    """Shrink tk/tn until the double-buffered working set fits the VMEM budget."""
    def footprint(tk_, tn_):
        x = 2 * tm * tk_ * 2                       # bf16, double-buffered
        w = 2 * tk_ * tn_ * 2
        o = 2 * tm * tn_ * 2
        r = 2 * tm * tn_ * 2 if has_res else 0
        acc = tm * tn_ * 4 if (Kp // tk_) > 1 else 0
        return x + w + o + r + acc

    while footprint(tk, tn) > _VMEM_BUDGET:
        if tk % 256 == 0 and Kp % (tk // 2) == 0 and (tk // 2) % 128 == 0:
            tk //= 2
        elif tn % 256 == 0 and Np % (tn // 2) == 0 and (tn // 2) % 128 == 0:
            tn //= 2
        else:
            break
    return tk, tn


# ---------------------------------------------------------------------------
# Pallas kernels: fused matmul + bias + LeakyReLU (+ residual)
# ---------------------------------------------------------------------------
def _fused_kernel_1k(x_ref, w_ref, b_ref, *rest, apply_act, has_residual):
    """Single-K-step path: no scratch accumulator at all."""
    if has_residual:
        r_ref, o_ref = rest
    else:
        (o_ref,) = rest
    out = jnp.dot(x_ref[...], w_ref[...], preferred_element_type=jnp.float32)
    out = out + b_ref[...]                                   # f32 epilogue
    if apply_act:
        out = jnp.maximum(out, LEAKY_SLOPE * out)            # LeakyReLU(0.01)
    if has_residual:
        out = out + r_ref[...].astype(jnp.float32)           # fused residual add
    o_ref[...] = out.astype(o_ref.dtype)


def _fused_kernel_multik(x_ref, w_ref, b_ref, *rest, apply_act, has_residual):
    """Multi-K-step path: f32 VMEM accumulator; first step writes directly."""
    if has_residual:
        r_ref, o_ref, acc_ref = rest
    else:
        o_ref, acc_ref = rest
    kk = pl.program_id(2)
    part = jnp.dot(x_ref[...], w_ref[...], preferred_element_type=jnp.float32)

    @pl.when(kk == 0)
    def _():
        acc_ref[...] = part                                  # no zero-init pass

    @pl.when(kk > 0)
    def _():
        acc_ref[...] += part

    @pl.when(kk == pl.num_programs(2) - 1)
    def _():
        out = acc_ref[...] + b_ref[...]
        if apply_act:
            out = jnp.maximum(out, LEAKY_SLOPE * out)
        if has_residual:
            out = out + r_ref[...].astype(jnp.float32)
        o_ref[...] = out.astype(o_ref.dtype)


def _pallas_conv_matmul(patches, w, bias, residual, apply_act):
    """patches:(M,K) bf16; w:(Kp,Np) bf16; bias:(1,Np) f32 -> (Mp,Np) bf16."""
    M, K = patches.shape
    Kp, Np = w.shape
    has_residual = residual is not None

    tm = _choose_tm(M)
    Mp = _round_up(M, tm)
    tk = _choose_tk(Kp)
    tn = _choose_tn(Np, Mp // tm)
    tk, tn = _fit_vmem(tm, tk, tn, Kp, Np, has_residual)
    k_blocks = Kp // tk

    if Mp != M or Kp != K:
        patches = jnp.pad(patches, ((0, Mp - M), (0, Kp - K)))

    inputs = [patches, w, bias]
    if has_residual:
        r = residual
        if r.shape != (Mp, Np):
            r = jnp.pad(r, ((0, Mp - r.shape[0]), (0, Np - r.shape[1])))
        inputs.append(r.astype(ACT_DTYPE))

    if k_blocks == 1:
        grid = (Mp // tm, Np // tn)
        in_specs = [
            pl.BlockSpec((tm, tk), lambda i, j: (i, 0)),
            pl.BlockSpec((tk, tn), lambda i, j: (0, j)),
            pl.BlockSpec((1, tn), lambda i, j: (0, j)),
        ]
        if has_residual:
            in_specs.append(pl.BlockSpec((tm, tn), lambda i, j: (i, j)))
        out_spec = pl.BlockSpec((tm, tn), lambda i, j: (i, j))
        kernel = functools.partial(_fused_kernel_1k, apply_act=apply_act,
                                   has_residual=has_residual)
        scratch = []
        dims = ("parallel", "parallel")
    else:
        grid = (Mp // tm, Np // tn, k_blocks)
        in_specs = [
            pl.BlockSpec((tm, tk), lambda i, j, kk: (i, kk)),
            pl.BlockSpec((tk, tn), lambda i, j, kk: (kk, j)),
            pl.BlockSpec((1, tn), lambda i, j, kk: (0, j)),
        ]
        if has_residual:
            in_specs.append(pl.BlockSpec((tm, tn), lambda i, j, kk: (i, j)))
        out_spec = pl.BlockSpec((tm, tn), lambda i, j, kk: (i, j))
        kernel = functools.partial(_fused_kernel_multik, apply_act=apply_act,
                                   has_residual=has_residual)
        scratch = [pltpu.VMEM((tm, tn), jnp.float32)]
        dims = ("parallel", "parallel", "arbitrary")

    return pl.pallas_call(
        kernel,
        out_shape=jax.ShapeDtypeStruct((Mp, Np), ACT_DTYPE),
        grid_spec=pltpu.PrefetchScalarGridSpec(
            num_scalar_prefetch=0, grid=grid, in_specs=in_specs,
            out_specs=out_spec, scratch_shapes=scratch),
        compiler_params=pltpu.CompilerParams(
            dimension_semantics=dims, vmem_limit_bytes=_VMEM_LIMIT),
    )(*inputs)


# ---------------------------------------------------------------------------
# one conv layer = patch extraction + fused Pallas matmul
# ---------------------------------------------------------------------------
class ConvMeta(NamedTuple):
    k: int
    stride: int
    pad: int
    act: bool
    out_c: int


def _conv_layer(x, w, bias, residual, *, meta):
    B, H, W, C = x.shape
    k, stride, pad = meta.k, meta.stride, meta.pad
    if k == 1 and stride == 1 and pad == 0:
        Ho, Wo = H, W
        patches = x.reshape(B * H * W, C)
    else:
        # TODO(synk): fuse the 3x3 tap gather into the matmul kernel (halo'd row
        # DMA per tap) to remove the ~9x patch-tensor HBM round trip on 3x3 layers.
        patches = lax.conv_general_dilated_patches(
            x, (k, k), (stride, stride), [(pad, pad), (pad, pad)],
            dimension_numbers=("NHWC", "HWIO", "NHWC"))
        _, Ho, Wo, KK = patches.shape
        patches = patches.reshape(B * Ho * Wo, KK)

    res2d = None
    if residual is not None:
        res2d = residual.reshape(B * Ho * Wo, residual.shape[-1])

    out = _pallas_conv_matmul(patches, w, bias, res2d, meta.act)
    out = out[:B * Ho * Wo, :meta.out_c]      # no-op except at the 3 head outputs
    return out.reshape(B, Ho, Wo, meta.out_c)


# ---------------------------------------------------------------------------
# deterministic parameter initialization (synthetic, no checkpoint load)
# ---------------------------------------------------------------------------
class _Rng:
    def __init__(self, seed):
        self._key = jax.random.PRNGKey(seed)

    def next(self):
        self._key, sub = jax.random.split(self._key)
        return sub


def _pack_layer(w_kkio, bias, *, k, stride, pad, act, out_c):
    """Flatten to matmul form, pre-pad to tile-friendly shapes, cast to bf16."""
    in_c = w_kkio.shape[2]
    # K-axis ordering (cin, ky, kx) matches lax.conv_general_dilated_patches
    # (channel-major, filter-spatial-minor); verified numerically in __main__.
    w2 = jnp.transpose(w_kkio, (2, 0, 1, 3)).reshape(k * k * in_c, out_c)
    K = w2.shape[0]
    if K % 128 == 0 or (K <= 128 and K % 8 == 0):
        Kp = K                               # full-extent K block, no padding
    else:
        Kp = _round_up(K, 128)
    Np = out_c if (out_c <= 128 or out_c % 128 == 0) else _round_up(out_c, 128)
    w2 = jnp.pad(w2, ((0, Kp - K), (0, Np - out_c)))
    b = jnp.pad(bias, (0, Np - out_c))
    arrays = dict(w=w2.astype(ACT_DTYPE),
                  bias=b.reshape(1, Np).astype(jnp.float32))
    return arrays, ConvMeta(k=k, stride=stride, pad=pad, act=act, out_c=out_c)


def _init_dbl(rng, in_c, out_c, k, stride, pad):
    """Conv2d + BatchNorm2d + LeakyReLU; BN folded into weights and bias."""
    fan_in = in_c * k * k
    w = jax.random.normal(rng.next(), (k, k, in_c, out_c),
                          jnp.float32) / jnp.sqrt(float(fan_in))
    conv_b = 0.01 * jax.random.normal(rng.next(), (out_c,), jnp.float32)
    gamma = 1.0 + 0.01 * jax.random.normal(rng.next(), (out_c,), jnp.float32)
    beta = 0.01 * jax.random.normal(rng.next(), (out_c,), jnp.float32)
    mean = 0.01 * jax.random.normal(rng.next(), (out_c,), jnp.float32)
    var = 1.0 + 0.1 * jax.random.uniform(rng.next(), (out_c,), jnp.float32)
    scale = gamma / jnp.sqrt(var + BN_EPS)
    bias = beta + (conv_b - mean) * scale
    return _pack_layer(w * scale, bias, k=k, stride=stride, pad=pad,
                       act=True, out_c=out_c)


def _init_conv(rng, in_c, out_c, k, stride, pad):
    """Plain Conv2d with bias (second layer of conv_final): no BN, no act."""
    fan_in = in_c * k * k
    w = jax.random.normal(rng.next(), (k, k, in_c, out_c),
                          jnp.float32) / jnp.sqrt(float(fan_in))
    conv_b = 0.01 * jax.random.normal(rng.next(), (out_c,), jnp.float32)
    return _pack_layer(w, conv_b, k=k, stride=stride, pad=pad,
                       act=False, out_c=out_c)


def init_yolov3(seed, class_num):
    rng = _Rng(seed)
    out_c_final = 255  # = 3 * (5 + class_num) with class_num = 80 (fixed in reference)
    params, meta = {}, {}

    def put(name, layer):
        params[name], meta[name] = layer

    def put_seq(name, layers):
        params[name] = [a for a, _ in layers]
        meta[name] = tuple(m for _, m in layers)

    def put_res(name, units):
        params[name] = [[a for a, _ in u] for u in units]
        meta[name] = tuple(tuple(m for _, m in u) for u in units)

    def res_block(in_c, num):
        return [[_init_dbl(rng, in_c, in_c // 2, 1, 1, 0),
                 _init_dbl(rng, in_c // 2, in_c, 3, 1, 1)] for _ in range(num)]

    def conv_set(in_c, out_c):
        inc = out_c * 2
        return [_init_dbl(rng, in_c, out_c, 1, 1, 0),
                _init_dbl(rng, out_c, inc, 3, 1, 1),
                _init_dbl(rng, inc, out_c, 1, 1, 0),
                _init_dbl(rng, out_c, inc, 3, 1, 1),
                _init_dbl(rng, inc, out_c, 1, 1, 0)]

    def conv_final(in_c, out_c):
        return [_init_dbl(rng, in_c, in_c * 2, 3, 1, 1),
                _init_conv(rng, in_c * 2, out_c, 1, 1, 0)]

    # Darknet53
    put("conv_1", _init_dbl(rng, 3, 32, 3, 1, 1))
    put("conv_2", _init_dbl(rng, 32, 64, 3, 2, 1))
    put_res("res_block1", res_block(64, 1))
    put("conv_3", _init_dbl(rng, 64, 128, 3, 2, 1))
    put_res("res_block2", res_block(128, 2))
    put("conv_4", _init_dbl(rng, 128, 256, 3, 2, 1))
    put_res("res_block3", res_block(256, 8))
    put("conv_5", _init_dbl(rng, 256, 512, 3, 2, 1))
    put_res("res_block4", res_block(512, 8))
    put("conv_6", _init_dbl(rng, 512, 1024, 3, 2, 1))
    put_res("res_block5", res_block(1024, 4))

    # YOLOv3 head
    put_seq("conv_set1", conv_set(1024, 512))
    put_seq("conv_final1", conv_final(512, out_c_final))
    put("conv_layer1", _init_dbl(rng, 512, 256, 1, 1, 0))
    put_seq("conv_set2", conv_set(768, 256))
    put_seq("conv_final2", conv_final(256, out_c_final))
    put("conv_layer2", _init_dbl(rng, 256, 128, 1, 1, 0))
    put_seq("conv_set3", conv_set(384, 128))
    put_seq("conv_final3", conv_final(128, out_c_final))
    return params, meta


# ---------------------------------------------------------------------------
# YOLO detection decode (inference branch of YoloDetection)
# ---------------------------------------------------------------------------
ANCHORS = {
    "grid52": [(10, 13), (16, 30), (33, 23)],
    "grid26": [(30, 61), (62, 45), (59, 119)],
    "grid13": [(116, 90), (156, 198), (373, 326)],
}


def _yolo_detection(pred_nhwc, anchors, img_size, class_num):
    B, G, _, _ = pred_nhwc.shape
    na = len(anchors)
    nc = class_num
    stride = img_size / G
    p = pred_nhwc.astype(jnp.float32).transpose(0, 3, 1, 2)      # NCHW (torch order)
    p = p.reshape(B, na, 5 + nc, G, G).transpose(0, 1, 3, 4, 2)  # (B, na, G, G, 5+nc)
    xy = jax.nn.sigmoid(p[..., 0:2])
    wh = p[..., 2:4]
    conf = jax.nn.sigmoid(p[..., 4:5])
    cls = jax.nn.sigmoid(p[..., 5:])
    gx = jnp.arange(G, dtype=jnp.float32).reshape(1, 1, 1, G)
    gy = jnp.arange(G, dtype=jnp.float32).reshape(1, 1, G, 1)
    anc = jnp.asarray(anchors, jnp.float32) / stride
    bx = xy[..., 0] + gx
    by = xy[..., 1] + gy
    bw = jnp.exp(wh[..., 0]) * anc[:, 0].reshape(1, na, 1, 1)
    bh = jnp.exp(wh[..., 1]) * anc[:, 1].reshape(1, na, 1, 1)
    boxes = jnp.stack([bx, by, bw, bh], axis=-1) * stride
    out = jnp.concatenate([boxes, conf, cls], axis=-1)
    return out.reshape(B, na * G * G, 5 + nc)


def _upsample2x(x):  # nearest-neighbour, NHWC (broadcast + reshape, no repeats)
    B, H, W, C = x.shape
    x = jnp.broadcast_to(x[:, :, None, :, None, :], (B, H, 2, W, 2, C))
    return x.reshape(B, 2 * H, 2 * W, C)


# ---------------------------------------------------------------------------
# full forward pass (one whole-network jit; static layer meta closed over)
# ---------------------------------------------------------------------------
def build_forward(meta, img_size, class_num):
    def conv(x, p, m, residual=None):
        return _conv_layer(x, p["w"], p["bias"], residual, meta=m)

    def seq(x, ps, ms):
        for p, m in zip(ps, ms):
            x = conv(x, p, m)
        return x

    def res_blocks(x, ps, ms):
        for (p1, p2), (m1, m2) in zip(ps, ms):
            h = conv(x, p1, m1)
            x = conv(h, p2, m2, residual=x)   # residual add fused into the kernel
        return x

    @jax.jit
    def forward(params, x_nchw):
        # TODO(synk): YoloDetection's training-loss branch (target != None) is not
        # reproduced (its source is not part of the reference); inference path only.
        x = jnp.transpose(x_nchw, (0, 2, 3, 1)).astype(ACT_DTYPE)  # NCHW -> NHWC bf16

        # Darknet53
        x = conv(x, params["conv_1"], meta["conv_1"])
        x = conv(x, params["conv_2"], meta["conv_2"])
        x = res_blocks(x, params["res_block1"], meta["res_block1"])
        x = conv(x, params["conv_3"], meta["conv_3"])
        x = res_blocks(x, params["res_block2"], meta["res_block2"])
        x = conv(x, params["conv_4"], meta["conv_4"])
        x = res_blocks(x, params["res_block3"], meta["res_block3"])
        res3 = x
        x = conv(x, params["conv_5"], meta["conv_5"])
        x = res_blocks(x, params["res_block4"], meta["res_block4"])
        res4 = x
        x = conv(x, params["conv_6"], meta["conv_6"])
        x = res_blocks(x, params["res_block5"], meta["res_block5"])
        res5 = x

        # YOLOv3 head
        out1 = seq(res5, params["conv_set1"], meta["conv_set1"])
        first = seq(out1, params["conv_final1"], meta["conv_final1"])
        anchor13 = _yolo_detection(first, ANCHORS["grid13"], img_size, class_num)

        # TODO(synk): fold upsample + channel-concat into the first 1x1 conv of
        # conv_set2/3 (split-K accumulate) to avoid materializing the concat tensor.
        out2 = conv(out1, params["conv_layer1"], meta["conv_layer1"])
        out2 = _upsample2x(out2)
        out2 = jnp.concatenate([out2, res4], axis=-1)     # torch.cat dim=1 (channels)
        out2 = seq(out2, params["conv_set2"], meta["conv_set2"])
        second = seq(out2, params["conv_final2"], meta["conv_final2"])
        anchor26 = _yolo_detection(second, ANCHORS["grid26"], img_size, class_num)

        out3 = conv(out2, params["conv_layer2"], meta["conv_layer2"])
        out3 = _upsample2x(out3)
        out3 = jnp.concatenate([out3, res3], axis=-1)
        out3 = seq(out3, params["conv_set3"], meta["conv_set3"])
        third = seq(out3, params["conv_final3"], meta["conv_final3"])
        anchor52 = _yolo_detection(third, ANCHORS["grid52"], img_size, class_num)

        return jnp.concatenate([anchor13, anchor26, anchor52], axis=1)

    return forward


# ---------------------------------------------------------------------------
# one-layer numeric self-check against lax.conv_general_dilated
# ---------------------------------------------------------------------------
def _conv_self_check():
    key = jax.random.PRNGKey(1)
    k1, k2, k3 = jax.random.split(key, 3)
    cin, cout, k, s, p = 16, 32, 3, 2, 1
    x = jax.random.normal(k1, (2, 16, 16, cin), jnp.float32)
    w = jax.random.normal(k2, (k, k, cin, cout),
                          jnp.float32) / jnp.sqrt(float(cin * k * k))
    b = 0.1 * jax.random.normal(k3, (cout,), jnp.float32)

    arrays, m = _pack_layer(w, b, k=k, stride=s, pad=p, act=True, out_c=cout)
    got = _conv_layer(x.astype(ACT_DTYPE), arrays["w"], arrays["bias"], None, meta=m)

    xq = x.astype(ACT_DTYPE).astype(jnp.float32)
    wq = w.astype(ACT_DTYPE).astype(jnp.float32)
    ref = lax.conv_general_dilated(xq, wq, (s, s), [(p, p), (p, p)],
                                   dimension_numbers=("NHWC", "HWIO", "NHWC"))
    ref = ref + b
    ref = jnp.maximum(ref, LEAKY_SLOPE * ref)
    err = float(jnp.max(jnp.abs(got.astype(jnp.float32) - ref)))
    assert err < 5e-2, f"conv layer self-check failed (max abs err {err})"


if __name__ == "__main__":
    IMG_SIZE = 64    # small but divisible by 32 (required by darknet strides)
    CLASS_NUM = 80   # 255 output channels = 3 * (5 + 80), fixed by conv_final
    BATCH = 2

    _conv_self_check()   # validates im2col K ordering / BN folding numerically

    params, meta = init_yolov3(0, CLASS_NUM)
    forward = build_forward(meta, IMG_SIZE, CLASS_NUM)

    key = jax.random.PRNGKey(0)
    x = jax.random.normal(key, (BATCH, 3, IMG_SIZE, IMG_SIZE), jnp.float32)

    out = forward(params, x)             # single whole-network jit
    out = jax.block_until_ready(out)

    expected_boxes = 3 * ((IMG_SIZE // 32) ** 2 +
                          (IMG_SIZE // 16) ** 2 +
                          (IMG_SIZE // 8) ** 2)
    assert out.shape == (BATCH, expected_boxes, 5 + CLASS_NUM), out.shape
    assert bool(jnp.all(jnp.isfinite(out)))
    print("KERNEL_OK")
</pallas_src>

<mosaic_0001>
module attributes {stable_mosaic.version = 11 : i64} {
  func.func @_fused_kernel_1k(%arg0: i32, %arg1: i32, %arg2: memref<128x256xbf16, #tpu.memory_space<vmem>>, %arg3: memref<256x32xbf16, #tpu.memory_space<vmem>>, %arg4: memref<1x32xf32, #tpu.memory_space<vmem>>, %arg5: memref<128x32xbf16, #tpu.memory_space<vmem>>) attributes {dimension_semantics = [#tpu.dimension_semantics<parallel>, #tpu.dimension_semantics<parallel>], iteration_bounds = array<i64: 1, 1>, scalar_prefetch = 0 : i64, scratch_operands = 0 : i64, tpu.core_type = #tpu.core_type<tc>, window_params = [{transform_indices = @transform_0, window_bounds = array<i64: 128, 256>}, {transform_indices = @transform_1, window_bounds = array<i64: 256, 32>}, {transform_indices = @transform_2, window_bounds = array<i64: 1, 32>}, {transform_indices = @transform_3, window_bounds = array<i64: 128, 32>}]} {
    %c0 = arith.constant 0 : index
    %c0_0 = arith.constant 0 : index
    %0 = vector.load %arg2[%c0, %c0_0] : memref<128x256xbf16, #tpu.memory_space<vmem>>, vector<128x256xbf16>
    %c0_1 = arith.constant 0 : index
    %c0_2 = arith.constant 0 : index
    %1 = vector.load %arg3[%c0_1, %c0_2] : memref<256x32xbf16, #tpu.memory_space<vmem>>, vector<256x32xbf16>
    %cst = arith.constant dense<0.000000e+00> : vector<128x32xf32>
    %2 = tpu.matmul %0, %1, %cst {dimension_numbers = #tpu.dot_dimension_numbers<[1], [0], [0], [1], [0, 0, 1, 1], [], []>} : vector<128x256xbf16>, vector<256x32xbf16>, vector<128x32xf32> -> vector<128x32xf32>
    %c0_3 = arith.constant 0 : index
    %c0_4 = arith.constant 0 : index
    %3 = vector.load %arg4[%c0_3, %c0_4] : memref<1x32xf32, #tpu.memory_space<vmem>>, vector<1x32xf32>
    %4 = vector.broadcast %3 : vector<1x32xf32> to vector<128x32xf32>
    %5 = arith.addf %2, %4 : vector<128x32xf32>
    %cst_5 = arith.constant 0.00999999977 : f32
    %6 = vector.broadcast %cst_5 : f32 to vector<128x32xf32>
    %7 = arith.mulf %6, %5 : vector<128x32xf32>
    %8 = arith.maximumf %5, %7 : vector<128x32xf32>
    %9 = arith.truncf %8 : vector<128x32xf32> to vector<128x32xbf16>
    %c0_6 = arith.constant 0 : index
    %c0_7 = arith.constant 0 : index
    %10 = vector.load %arg5[%c0_6, %c0_7] : memref<128x32xbf16, #tpu.memory_space<vmem>>, vector<128x32xbf16>
    tpu.vector_store %arg5[%c0_6, %c0_7], %9 {strides = array<i32>} : memref<128x32xbf16, #tpu.memory_space<vmem>>, vector<128x32xbf16>,
    return
  }
  func.func @transform_0(%arg0: i32, %arg1: i32) -> (i32, i32) {
    %c0_i32 = arith.constant 0 : i32
    %c0_i32_0 = arith.constant 0 : i32
    return %arg0, %c0_i32 : i32, i32
  }
  func.func @transform_1(%arg0: i32, %arg1: i32) -> (i32, i32) {
    %c0_i32 = arith.constant 0 : i32
    %c0_i32_0 = arith.constant 0 : i32
    return %c0_i32, %arg1 : i32, i32
  }
  func.func @transform_2(%arg0: i32, %arg1: i32) -> (i32, i32) {
    %c0_i32 = arith.constant 0 : i32
    %c0_i32_0 = arith.constant 0 : i32
    return %c0_i32, %arg1 : i32, i32
  }
  func.func @transform_3(%arg0: i32, %arg1: i32) -> (i32, i32) {
    %c0_i32 = arith.constant 0 : i32
    return %arg0, %arg1 : i32, i32
  }
}

</mosaic_0001>

<llo_original>
// kernel: tpu_custom_call.1
$region0: #{tpu_custom_call.1}
  #allocation0 [shape = 'u32[]', space=smem, size = 0x4, offset = 0x4, fixed_abs, tag = 'smem constant byte address 0x4 - core index']
  #allocation1 [shape = 'u32[72,128]{1,0:T(1,128)}', space=vmem, size = 0x9000, scoped, tag = 'internal scratch']
  %s0 = inlined_call_operand.vmem [shape: bf16[128,256], index: 0, kind: input, shape index: {}]
  %s1 = inlined_call_operand.vmem [shape: bf16[256,32], index: 1, kind: input, shape index: {}]
  %s2 = inlined_call_operand.vmem [shape: f32[1,32], index: 2, kind: input, shape index: {}]
  %s3 = inlined_call_operand.vmem [shape: bf16[128,32], index: 3, kind: output, shape index: {}]
  %s4 = sld [smem:[#allocation0]]
  $region22: #{tpu_custom_call.1} parent=0
    _
  %s6 = ssub.s32 1, %s4
  %s7 = scalar_select 0, %s6, %s4
  // Predicated region
  $region2: #{tpu_custom_call.1} parent=0 // pred_check
    _
  $region3: #{tpu_custom_call.1} parent=0 // pred_check_branch
    %9 = sbr.rel (0) target = $region5
  $region4: #{tpu_custom_call.1} parent=0 // pred_region
    _
  $region5: #{tpu_custom_call.1} parent=0 // pred_fallthru
    _
  // Predicated region
  $region6: #{tpu_custom_call.1} parent=0 // pred_check
    _
  $region7: #{tpu_custom_call.1} parent=0 // pred_check_branch
    %11 = sbr.rel (0) target = $region9
  $region8: #{tpu_custom_call.1} parent=0 // pred_region
    _
  $region9: #{tpu_custom_call.1} parent=0 // pred_fallthru
    _
  // Predicated region
  $region10: #{tpu_custom_call.1} parent=0 // pred_check
    _
  $region11: #{tpu_custom_call.1} parent=0 // pred_check_branch
    %13 = sbr.rel (0) target = $region13
  $region12: #{tpu_custom_call.1} parent=0 // pred_region
    _
  $region13: #{tpu_custom_call.1} parent=0 // pred_fallthru
    _
  %v14 = vld [vmem:[%s0] sm:$0xff]
  %v15 = vld [vmem:[%s0 + $0x8] sm:$0xff]
  %v16 = vld [vmem:[%s0 + $0x10] sm:$0xff]
  %v17 = vld [vmem:[%s0 + $0x18] sm:$0xff]
  %v18 = vld [vmem:[%s0 + $0x20] sm:$0xff]
  %v19 = vld [vmem:[%s0 + $0x28] sm:$0xff]
  %v20 = vld [vmem:[%s0 + $0x30] sm:$0xff]
  %v21 = vld [vmem:[%s0 + $0x38] sm:$0xff]
  %v22 = vld [vmem:[%s0 + $0x40] sm:$0xff]
  %v23 = vld [vmem:[%s0 + $0x48] sm:$0xff]
  %v24 = vld [vmem:[%s0 + $0x50] sm:$0xff]
  %v25 = vld [vmem:[%s0 + $0x58] sm:$0xff]
  %v26 = vld [vmem:[%s0 + $0x60] sm:$0xff]
  %v27 = vld [vmem:[%s0 + $0x68] sm:$0xff]
  %v28 = vld [vmem:[%s0 + $0x70] sm:$0xff]
  %v29 = vld [vmem:[%s0 + $0x78] sm:$0xff]
  %v30 = vld [vmem:[%s1] sm:$0xf]
  %v31 = vld [vmem:[%s1 + $0x4] sm:$0xf]
  %v32 = vld [vmem:[%s1 + $0x8] sm:$0xf]
  %v33 = vld [vmem:[%s1 + $0xc] sm:$0xf]
  %v34 = vld [vmem:[%s1 + $0x10] sm:$0xf]
  %v35 = vld [vmem:[%s1 + $0x14] sm:$0xf]
  %v36 = vld [vmem:[%s1 + $0x18] sm:$0xf]
  %v37 = vld [vmem:[%s1 + $0x1c] sm:$0xf]
  %v38 = vld [vmem:[%s1 + $0x20] sm:$0xf]
  %v39 = vld [vmem:[%s1 + $0x24] sm:$0xf]
  %v40 = vld [vmem:[%s1 + $0x28] sm:$0xf]
  %v41 = vld [vmem:[%s1 + $0x2c] sm:$0xf]
  %v42 = vld [vmem:[%s1 + $0x30] sm:$0xf]
  %v43 = vld [vmem:[%s1 + $0x34] sm:$0xf]
  %v44 = vld [vmem:[%s1 + $0x38] sm:$0xf]
  %v45 = vld [vmem:[%s1 + $0x3c] sm:$0xf]
  %v46 = vld [vmem:[%s1 + $0x40] sm:$0xf]
  %v47 = vld [vmem:[%s1 + $0x44] sm:$0xf]
  %v48 = vld [vmem:[%s1 + $0x48] sm:$0xf]
  %v49 = vld [vmem:[%s1 + $0x4c] sm:$0xf]
  %v50 = vld [vmem:[%s1 + $0x50] sm:$0xf]
  %v51 = vld [vmem:[%s1 + $0x54] sm:$0xf]
  %v52 = vld [vmem:[%s1 + $0x58] sm:$0xf]
  %v53 = vld [vmem:[%s1 + $0x5c] sm:$0xf]
  %v54 = vld [vmem:[%s1 + $0x60] sm:$0xf]
  %v55 = vld [vmem:[%s1 + $0x64] sm:$0xf]
  %v56 = vld [vmem:[%s1 + $0x68] sm:$0xf]
  %v57 = vld [vmem:[%s1 + $0x6c] sm:$0xf]
  %v58 = vld [vmem:[%s1 + $0x70] sm:$0xf]
  %v59 = vld [vmem:[%s1 + $0x74] sm:$0xf]
  %v60 = vld [vmem:[%s1 + $0x78] sm:$0xf]
  %v61 = vld [vmem:[%s1 + $0x7c] sm:$0xf]
  %v62 = vld [vmem:[%s2] sm:$0x1]
  %v64 = vperm.slane %v62, 0
  %v82 = vunpack.c.l.b16 %v14
  %v83 = vunpack.c.h.b16 %v14
  %v84 = vunpack.c.l.b16 %v15
  %v85 = vunpack.c.h.b16 %v15
  %v86 = vunpack.c.l.b16 %v16
  %v87 = vunpack.c.h.b16 %v16
  %v88 = vunpack.c.l.b16 %v17
  %v89 = vunpack.c.h.b16 %v17
  %v90 = vunpack.c.l.b16 %v18
  %v91 = vunpack.c.h.b16 %v18
  %v92 = vunpack.c.l.b16 %v19
  %v93 = vunpack.c.h.b16 %v19
  %v94 = vunpack.c.l.b16 %v20
  %v95 = vunpack.c.h.b16 %v20
  %v96 = vunpack.c.l.b16 %v21
  %v97 = vunpack.c.h.b16 %v21
  %v98 = vunpack.c.l.b16 %v22
  %v99 = vunpack.c.h.b16 %v22
  %v100 = vunpack.c.l.b16 %v23
  %v101 = vunpack.c.h.b16 %v23
  %v102 = vunpack.c.l.b16 %v24
  %v103 = vunpack.c.h.b16 %v24
  %v104 = vunpack.c.l.b16 %v25
  %v105 = vunpack.c.h.b16 %v25
  %v106 = vunpack.c.l.b16 %v26
  %v107 = vunpack.c.h.b16 %v26
  %v108 = vunpack.c.l.b16 %v27
  %v109 = vunpack.c.h.b16 %v27
  %v110 = vunpack.c.l.b16 %v28
  %v111 = vunpack.c.h.b16 %v28
  %v112 = vunpack.c.l.b16 %v29
  %v113 = vunpack.c.h.b16 %v29
  %v114 = vpack.c.b16 %v84, %v82
  %v115 = vpack.c.b16 %v85, %v83
  %v116 = vpack.c.b16 %v88, %v86
  %v117 = vpack.c.b16 %v89, %v87
  %v118 = vpack.c.b16 %v92, %v90
  %v119 = vpack.c.b16 %v93, %v91
  %v120 = vpack.c.b16 %v96, %v94
  %v121 = vpack.c.b16 %v97, %v95
  %v122 = vpack.c.b16 %v100, %v98
  %v123 = vpack.c.b16 %v101, %v99
  %v124 = vpack.c.b16 %v104, %v102
  %v125 = vpack.c.b16 %v105, %v103
  %v126 = vpack.c.b16 %v108, %v106
  %v127 = vpack.c.b16 %v109, %v107
  %v128 = vpack.c.b16 %v112, %v110
  %v129 = vpack.c.b16 %v113, %v111
  %v178 = vunpack.c.l.b16 %v30
  %v179 = vunpack.c.l.b16 %v31
  %v180 = vunpack.c.l.b16 %v32
  %v181 = vunpack.c.l.b16 %v33
  %v182 = vunpack.c.l.b16 %v34
  %v183 = vunpack.c.l.b16 %v35
  %v184 = vunpack.c.l.b16 %v36
  %v185 = vunpack.c.l.b16 %v37
  %v186 = vunpack.c.l.b16 %v38
  %v187 = vunpack.c.l.b16 %v39
  %v188 = vunpack.c.l.b16 %v40
  %v189 = vunpack.c.l.b16 %v41
  %v190 = vunpack.c.l.b16 %v42
  %v191 = vunpack.c.l.b16 %v43
  %v192 = vunpack.c.l.b16 %v44
  %v193 = vunpack.c.l.b16 %v45
  %v194 = vunpack.c.l.b16 %v46
  %v195 = vunpack.c.l.b16 %v47
  %v196 = vunpack.c.l.b16 %v48
  %v197 = vunpack.c.l.b16 %v49
  %v198 = vunpack.c.l.b16 %v50
  %v199 = vunpack.c.l.b16 %v51
  %v200 = vunpack.c.l.b16 %v52
  %v201 = vunpack.c.l.b16 %v53
  %v202 = vunpack.c.l.b16 %v54
  %v203 = vunpack.c.l.b16 %v55
  %v204 = vunpack.c.l.b16 %v56
  %v205 = vunpack.c.l.b16 %v57
  %v206 = vunpack.c.l.b16 %v58
  %v207 = vunpack.c.l.b16 %v59
  %v208 = vunpack.c.l.b16 %v60
  %v209 = vunpack.c.l.b16 %v61
  %v210 = vpack.c.b16 %v179, %v178
  %v211 = vpack.c.b16 %v181, %v180
  %v212 = vpack.c.b16 %v183, %v182
  %v213 = vpack.c.b16 %v185, %v184
  %v214 = vpack.c.b16 %v187, %v186
  %v215 = vpack.c.b16 %v189, %v188
  %v216 = vpack.c.b16 %v191, %v190
  %v217 = vpack.c.b16 %v193, %v192
  %v218 = vpack.c.b16 %v195, %v194
  %v219 = vpack.c.b16 %v197, %v196
  %v220 = vpack.c.b16 %v199, %v198
  %v221 = vpack.c.b16 %v201, %v200
  %v222 = vpack.c.b16 %v203, %v202
  %v223 = vpack.c.b16 %v205, %v204
  %v224 = vpack.c.b16 %v207, %v206
  %v225 = vpack.c.b16 %v209, %v208
  %242 = vmatpush.bf16.msra.mxu0 %v217
  %243 = vmatpush.bf16.msra.mxu0 %v216
  %244 = vmatpush.bf16.msra.mxu0 %v215
  %245 = vmatpush.bf16.msra.mxu0 %v214
  %246 = vmatpush.bf16.msra.mxu0 %v213
  %247 = vmatpush.bf16.msra.mxu0 %v212
  %248 = vmatpush.bf16.msra.mxu0 %v211
  %249 = vmatpush.bf16.msra.mxu0 %v210
  %250 = vmatmul.bf16.gmra.mxu0 %v114
  %v251 = vpop.f32.mrf.mxu0
  %v252 = vadd.f32 %v64, %v251
  %v253 = vpop.f32.mrf.mxu0
  %v254 = vadd.f32 %v64, %v253
  %255 = vmatmul.bf16.gmra.mxu0 %v116
  %v256 = vpop.f32.mrf.mxu0
  %v257 = vadd.f32 %v64, %v256
  %v258 = vpop.f32.mrf.mxu0
  %v259 = vadd.f32 %v64, %v258
  %260 = vmatmul.bf16.gmra.mxu0 %v118
  %v261 = vpop.f32.mrf.mxu0
  %v262 = vadd.f32 %v64, %v261
  %v263 = vpop.f32.mrf.mxu0
  %v264 = vadd.f32 %v64, %v263
  %265 = vmatmul.bf16.gmra.mxu0 %v120
  %v266 = vpop.f32.mrf.mxu0
  %v267 = vadd.f32 %v64, %v266
  %v268 = vpop.f32.mrf.mxu0
  %v269 = vadd.f32 %v64, %v268
  %270 = vmatmul.bf16.gmra.mxu0 %v122
  %v271 = vpop.f32.mrf.mxu0
  %v272 = vadd.f32 %v64, %v271
  %v273 = vpop.f32.mrf.mxu0
  %v274 = vadd.f32 %v64, %v273
  %275 = vmatmul.bf16.gmra.mxu0 %v124
  %v276 = vpop.f32.mrf.mxu0
  %v277 = vadd.f32 %v64, %v276
  %v278 = vpop.f32.mrf.mxu0
  %v279 = vadd.f32 %v64, %v278
  %280 = vmatmul.bf16.gmra.mxu0 %v126
  %v281 = vpop.f32.mrf.mxu0
  %v282 = vadd.f32 %v64, %v281
  %v283 = vpop.f32.mrf.mxu0
  %v284 = vadd.f32 %v64, %v283
  %285 = vmatmul.bf16.gmra.mxu0 %v128
  %v286 = vpop.f32.mrf.mxu0
  %v287 = vadd.f32 %v64, %v286
  %v288 = vpop.f32.mrf.mxu0
  %v289 = vadd.f32 %v64, %v288
  %290 = vdwg.mxu0
  %291 = vmatpush.bf16.msra.mxu0 %v225
  %292 = vmatpush.bf16.msra.mxu0 %v224
  %293 = vmatpush.bf16.msra.mxu0 %v223
  %294 = vmatpush.bf16.msra.mxu0 %v222
  %295 = vmatpush.bf16.msra.mxu0 %v221
  %296 = vmatpush.bf16.msra.mxu0 %v220
  %297 = vmatpush.bf16.msra.mxu0 %v219
  %298 = vmatpush.bf16.msra.mxu0 %v218
  %299 = vmatmul.bf16.gmra.mxu0 %v115
  %v300 = vpop.f32.mrf.mxu0
  %v301 = vadd.f32 %v252, %v300
  %v302 = vpop.f32.mrf.mxu0
  %v303 = vadd.f32 %v254, %v302
  %304 = vmatmul.bf16.gmra.mxu0 %v117
  %v305 = vpop.f32.mrf.mxu0
  %v306 = vadd.f32 %v257, %v305
  %v307 = vpop.f32.mrf.mxu0
  %v308 = vadd.f32 %v259, %v307
  %309 = vmatmul.bf16.gmra.mxu0 %v119
  %v310 = vpop.f32.mrf.mxu0
  %v311 = vadd.f32 %v262, %v310
  %v312 = vpop.f32.mrf.mxu0
  %v313 = vadd.f32 %v264, %v312
  %314 = vmatmul.bf16.gmra.mxu0 %v121
  %v315 = vpop.f32.mrf.mxu0
  %v316 = vadd.f32 %v267, %v315
  %v317 = vpop.f32.mrf.mxu0
  %v318 = vadd.f32 %v269, %v317
  %319 = vmatmul.bf16.gmra.mxu0 %v123
  %v320 = vpop.f32.mrf.mxu0
  %v321 = vadd.f32 %v272, %v320
  %v322 = vpop.f32.mrf.mxu0
  %v323 = vadd.f32 %v274, %v322
  %324 = vmatmul.bf16.gmra.mxu0 %v125
  %v325 = vpop.f32.mrf.mxu0
  %v326 = vadd.f32 %v277, %v325
  %v327 = vpop.f32.mrf.mxu0
  %v328 = vadd.f32 %v279, %v327
  %329 = vmatmul.bf16.gmra.mxu0 %v127
  %v330 = vpop.f32.mrf.mxu0
  %v331 = vadd.f32 %v282, %v330
  %v332 = vpop.f32.mrf.mxu0
  %v333 = vadd.f32 %v284, %v332
  %334 = vmatmul.bf16.gmra.mxu0 %v129
  %v335 = vpop.f32.mrf.mxu0
  %v336 = vadd.f32 %v287, %v335
  %v337 = vpop.f32.mrf.mxu0
  %v338 = vadd.f32 %v289, %v337
  %339 = vdwg.mxu0
  %v340 = vmul.f32 %v301, 0.01
  %v341 = vmul.f32 %v303, 0.01
  %v342 = vmul.f32 %v306, 0.01
  %v343 = vmul.f32 %v308, 0.01
  %v344 = vmul.f32 %v311, 0.01
  %v345 = vmul.f32 %v313, 0.01
  %v346 = vmul.f32 %v316, 0.01
  %v347 = vmul.f32 %v318, 0.01
  %v348 = vmul.f32 %v321, 0.01
  %v349 = vmul.f32 %v323, 0.01
  %v350 = vmul.f32 %v326, 0.01
  %v351 = vmul.f32 %v328, 0.01
  %v352 = vmul.f32 %v331, 0.01
  %v353 = vmul.f32 %v333, 0.01
  %v354 = vmul.f32 %v336, 0.01
  %v355 = vmul.f32 %v338, 0.01
  %v356 = vmax.f32 %v301, %v340
  %v357 = vmax.f32 %v303, %v341
  %v358 = vmax.f32 %v306, %v342
  %v359 = vmax.f32 %v308, %v343
  %v360 = vmax.f32 %v311, %v344
  %v361 = vmax.f32 %v313, %v345
  %v362 = vmax.f32 %v316, %v346
  %v363 = vmax.f32 %v318, %v347
  %v364 = vmax.f32 %v321, %v348
  %v365 = vmax.f32 %v323, %v349
  %v366 = vmax.f32 %v326, %v350
  %v367 = vmax.f32 %v328, %v351
  %v368 = vmax.f32 %v331, %v352
  %v369 = vmax.f32 %v333, %v353
  %v370 = vmax.f32 %v336, %v354
  %v371 = vmax.f32 %v338, %v355
  %v372 = vpack.c.bf16 %v356, %v356
  %v373 = vpack.c.bf16 %v357, %v357
  %v374 = vpack.c.bf16 %v358, %v358
  %v375 = vpack.c.bf16 %v359, %v359
  %v376 = vpack.c.bf16 %v360, %v360
  %v377 = vpack.c.bf16 %v361, %v361
  %v378 = vpack.c.bf16 %v362, %v362
  %v379 = vpack.c.bf16 %v363, %v363
  %v380 = vpack.c.bf16 %v364, %v364
  %v381 = vpack.c.bf16 %v365, %v365
  %v382 = vpack.c.bf16 %v366, %v366
  %v383 = vpack.c.bf16 %v367, %v367
  %v384 = vpack.c.bf16 %v368, %v368
  %v385 = vpack.c.bf16 %v369, %v369
  %v386 = vpack.c.bf16 %v370, %v370
  %v387 = vpack.c.bf16 %v371, %v371
  %vm388 = vcmask 257024
  %389 = vst.msk [vmem:[%s3] sm:$0xf] %vm388, %v372
  %390 = vst.msk [vmem:[%s3 + $0x4] sm:$0xf] %vm388, %v373
  %391 = vst.msk [vmem:[%s3 + $0x8] sm:$0xf] %vm388, %v374
  %392 = vst.msk [vmem:[%s3 + $0xc] sm:$0xf] %vm388, %v375
  %393 = vst.msk [vmem:[%s3 + $0x10] sm:$0xf] %vm388, %v376
  %394 = vst.msk [vmem:[%s3 + $0x14] sm:$0xf] %vm388, %v377
  %395 = vst.msk [vmem:[%s3 + $0x18] sm:$0xf] %vm388, %v378
  %396 = vst.msk [vmem:[%s3 + $0x1c] sm:$0xf] %vm388, %v379
  %397 = vst.msk [vmem:[%s3 + $0x20] sm:$0xf] %vm388, %v380
  %398 = vst.msk [vmem:[%s3 + $0x24] sm:$0xf] %vm388, %v381
  %399 = vst.msk [vmem:[%s3 + $0x28] sm:$0xf] %vm388, %v382
  %400 = vst.msk [vmem:[%s3 + $0x2c] sm:$0xf] %vm388, %v383
  %401 = vst.msk [vmem:[%s3 + $0x30] sm:$0xf] %vm388, %v384
  %402 = vst.msk [vmem:[%s3 + $0x34] sm:$0xf] %vm388, %v385
  %403 = vst.msk [vmem:[%s3 + $0x38] sm:$0xf] %vm388, %v386
  %404 = vst.msk [vmem:[%s3 + $0x3c] sm:$0xf] %vm388, %v387
  // Predicated region
  $region14: #{tpu_custom_call.1} parent=0 // pred_check
    _
  $region15: #{tpu_custom_call.1} parent=0 // pred_check_branch
    %406 = sbr.rel (0) target = $region17
  $region16: #{tpu_custom_call.1} parent=0 // pred_region
    _
  $region17: #{tpu_custom_call.1} parent=0 // pred_fallthru
    _
  // Predicated region
  $region18: #{tpu_custom_call.1} parent=0 // pred_check
    _
  $region19: #{tpu_custom_call.1} parent=0 // pred_check_branch
    %408 = sbr.rel (0) target = $region21
  $region20: #{tpu_custom_call.1} parent=0 // pred_region
    _
  $region21: #{tpu_custom_call.1} parent=0 // pred_fallthru
    _

</llo_original>
